<compile_context>
chip_gen: v7x
topology: tpu7x:2x2x1
jax: 0.10.0
libtpu: 0.0.40
codegen_flags: <defaults>
</compile_context>

<pallas_src>
import functools

import jax
import jax.numpy as jnp
from jax.experimental import pallas as pl
from jax.experimental.pallas import tpu as pltpu


def _sigmoid(x):
    # sigmoid(x) == 0.5 * (1 + tanh(x / 2)): a single EUP op per call.
    return 0.5 * (jnp.tanh(0.5 * x) + 1.0)


def _circle_loss_kernel(sp_ref, sn_ref, out_ref,
                        loss_acc, sp_acc, sp2_acc, sn_acc, sn2_acc, *,
                        m, gamma, soft_margin, n_valid, tile_b, km1):
    i = pl.program_id(0)
    n_blocks = pl.num_programs(0)

    # ---- init per-lane running sums on the first step ------------------------
    @pl.when(i == 0)
    def _init():
        loss_acc[...] = jnp.zeros_like(loss_acc)
        sp_acc[...] = jnp.zeros_like(sp_acc)
        sp2_acc[...] = jnp.zeros_like(sp2_acc)
        sn_acc[...] = jnp.zeros_like(sn_acc)
        sn2_acc[...] = jnp.zeros_like(sn2_acc)

    # Inputs may be bf16 in HBM; compute in f32 (required on v5e, matches torch).
    sp = sp_ref[...].astype(jnp.float32)      # [1, tile_b]   (anchors on lanes)
    sn = sn_ref[...].astype(jnp.float32)      # [km1, tile_b] (classes on sublanes)

    # ---- CircleLoss per-anchor math ------------------------------------------
    # (torch detaches sp/sn for ap/an; the forward value is identical.)
    ap = jnp.maximum(-sp + (1.0 + m), 0.0)
    an = jnp.maximum(sn + m, 0.0)
    delta_p = (1.0 - m) + soft_margin * _sigmoid(sp - 0.8)
    delta_n = m - soft_margin * _sigmoid(-sn - 0.2)
    logit_p = -ap * (sp - delta_p) * gamma            # [1, tile_b]
    logit_n = an * (sn - delta_n) * gamma             # [km1, tile_b]

    # logsumexp over the class axis = sublane axis: cross-vreg max/add is plain
    # VPU work; only the final intra-vreg sublane fold touches the XLU.
    mx = jnp.max(logit_n, axis=0, keepdims=True)                          # [1, tile_b]
    lse_n = jnp.log(jnp.sum(jnp.exp(logit_n - mx), axis=0, keepdims=True)) + mx
    z = lse_n + logit_p              # logsumexp over the size-1 sp axis == identity

    # Numerically stable softplus.
    loss = jnp.maximum(z, 0.0) + jnp.log1p(jnp.exp(-jnp.abs(z)))          # [1, tile_b]

    # Per-lane (per-anchor) partial statistics for this tile.
    sp2_col = sp * sp                                                     # [1, tile_b]
    sn_col = jnp.sum(sn, axis=0, keepdims=True)                           # [1, tile_b]
    sn2_col = jnp.sum(sn * sn, axis=0, keepdims=True)                     # [1, tile_b]

    def _accumulate(valid):
        if valid is None:
            l, a, a2, b, b2 = loss, sp, sp2_col, sn_col, sn2_col
        else:
            zero = jnp.float32(0.0)
            l = jnp.where(valid, loss, zero)
            a = jnp.where(valid, sp, zero)
            a2 = jnp.where(valid, sp2_col, zero)
            b = jnp.where(valid, sn_col, zero)
            b2 = jnp.where(valid, sn2_col, zero)
        loss_acc[...] += l
        sp_acc[...] += a
        sp2_acc[...] += a2
        sn_acc[...] += b
        sn2_acc[...] += b2

    # ---- accumulate; ragged last block is masked ONLY on the last step -------
    if n_valid % tile_b == 0:
        _accumulate(None)                      # static: never any padding
    else:
        @pl.when(i < n_blocks - 1)
        def _acc_full():
            _accumulate(None)

        @pl.when(i == n_blocks - 1)
        def _acc_ragged():
            # Lanes >= n_valid of the last block were never DMA'd (undefined):
            # mask every accumulated quantity on this step only.
            lane = jax.lax.broadcasted_iota(jnp.int32, (1, tile_b), 1)
            valid = (i * tile_b + lane) < n_valid
            _accumulate(valid)

    # ---- finalize on the last step --------------------------------------------
    @pl.when(i == n_blocks - 1)
    def _finalize():
        # n_valid / km1 are Python ints -> reciprocals are compile-time consts.
        n_sp = float(n_valid)
        n_sn = float(n_valid * km1)
        inv_sp_den = 1.0 / (n_sp - 1.0) if n_valid > 1 else float("nan")
        inv_sn_den = 1.0 / (n_sn - 1.0) if n_valid * km1 > 1 else float("nan")

        total_loss = jnp.sum(loss_acc[...])
        s1 = jnp.sum(sp_acc[...])
        s2 = jnp.sum(sp2_acc[...])
        t1 = jnp.sum(sn_acc[...])
        t2 = jnp.sum(sn2_acc[...])

        mean_loss = total_loss * (1.0 / n_sp)
        mu_sp = s1 * (1.0 / n_sp)
        mu_sn = t1 * (1.0 / n_sn)
        # torch.std is unbiased (N-1).  Single-pass form is safe because the
        # similarities are bounded (|s| <= 1); for unbounded inputs a Welford /
        # pairwise accumulation would be preferable.
        var_sp = (s2 - n_sp * mu_sp * mu_sp) * inv_sp_den
        var_sn = (t2 - n_sn * mu_sn * mu_sn) * inv_sn_den
        std_reg = 0.1 * (jnp.sqrt(jnp.maximum(var_sp, 0.0)) +
                         jnp.sqrt(jnp.maximum(var_sn, 0.0)))
        out_ref[0] = mean_loss + std_reg


def _round_up(x, mult):
    return ((x + mult - 1) // mult) * mult


def _pick_tile_b(n, km1):
    # Size the sn tile by bytes (~2 MiB of f32 per pipeline buffer) so the
    # per-grid-step overhead (~0.35 us) is well amortized while double-buffered
    # inputs + f32 intermediates + the five per-lane accumulators stay inside
    # the scoped-VMEM budget on every generation (v7x has only 64 MiB/TC).
    target_bytes = 2 * 1024 * 1024
    t = target_bytes // max(km1 * 4, 1)
    t = max(128, min(t, 32 * 1024))     # lane cap keeps the accumulators small
    t = (t // 128) * 128
    return min(t, _round_up(n, 128))


def circle_loss(sp, sn, *, m=0.25, gamma=64.0, soft_margin=0.1, tile_b=None,
                class_major=False):
    """CircleLoss forward.

    sp: [N, 1], sn: [N, K-1]  (torch layout), or with class_major=True
    sp: [1, N], sn: [K-1, N]  (skips the wrapper transpose / its HBM pass).
    Returns a float32 scalar.
    """
    if class_major:
        km1, n = sn.shape
        assert sp.shape == (1, n), "class_major sp must have shape [1, N]"
        sp_t, sn_t = sp, sn
    else:
        n, k_sp = sp.shape
        assert k_sp == 1, "sp must have shape [N, 1]"
        assert sn.shape[0] == n, "sp / sn batch mismatch"
        km1 = sn.shape[1]
        # Lane-dense layout: anchors on lanes, classes on sublanes.
        sp_t = jnp.reshape(sp, (1, n))     # [N,1] -> [1,N]  (no data movement)
        sn_t = jnp.transpose(sn)           # [N,K-1] -> [K-1,N]  (one HBM pass)

    if tile_b is None:
        tile_b = _pick_tile_b(n, km1)
    tile_b = max(128, (int(tile_b) // 128) * 128)
    tile_b = min(tile_b, _round_up(n, 128))

    grid = (pl.cdiv(n, tile_b),)

    kernel = functools.partial(
        _circle_loss_kernel,
        m=float(m), gamma=float(gamma), soft_margin=float(soft_margin),
        n_valid=int(n), tile_b=int(tile_b), km1=int(km1))

    out = pl.pallas_call(
        kernel,
        grid=grid,
        in_specs=[
            # sp is tiled per-step rather than kept fully resident: a resident
            # [1, N] buffer sublane-pads to 32*N bytes of VMEM, which does not
            # scale with N, and after the tile-size fix the per-step DMA count
            # is small enough that the extra descriptor is negligible.
            pl.BlockSpec((1, tile_b), lambda i: (0, i)),
            pl.BlockSpec((km1, tile_b), lambda i: (0, i)),
        ],
        out_specs=pl.BlockSpec(memory_space=pltpu.MemorySpace.SMEM),
        out_shape=jax.ShapeDtypeStruct((1,), jnp.float32),
        scratch_shapes=[pltpu.VMEM((1, tile_b), jnp.float32) for _ in range(5)],
        compiler_params=pltpu.CompilerParams(
            # The batch axis carries the VMEM accumulators across steps -> it
            # is a reduction axis ("arbitrary").
            dimension_semantics=("arbitrary",),
            vmem_limit_bytes=48 * 1024 * 1024,
        ),
    )(sp_t, sn_t)
    return out[0]


def _circle_loss_ref(sp, sn, *, m=0.25, gamma=64.0, soft_margin=0.1):
    sp = sp.astype(jnp.float32)
    sn = sn.astype(jnp.float32)
    ap = jnp.maximum(-sp + 1.0 + m, 0.0)
    an = jnp.maximum(sn + m, 0.0)
    delta_p = 1.0 - m + soft_margin * jax.nn.sigmoid(sp - 0.8)
    delta_n = m - soft_margin * jax.nn.sigmoid(-sn - 0.2)
    logit_p = -ap * (sp - delta_p) * gamma
    logit_n = an * (sn - delta_n) * gamma
    std_reg = 0.1 * (jnp.std(sp, ddof=1) + jnp.std(sn, ddof=1))
    z = (jax.scipy.special.logsumexp(logit_n, axis=1)
         + jax.scipy.special.logsumexp(logit_p, axis=1))
    loss = jax.nn.softplus(z)
    return loss.mean() + std_reg


if __name__ == "__main__":
    key = jax.random.PRNGKey(0)
    k1, k2 = jax.random.split(key)

    N = 300         # deliberately not a multiple of the 128-lane tile
    K_MINUS_1 = 16  # small class count -> exercises the lane-dense layout

    # Similarities (e.g. cosine similarities) in [-1, 1].
    sp = jax.random.uniform(k1, (N, 1), jnp.float32, minval=-1.0, maxval=1.0)
    sn = jax.random.uniform(k2, (N, K_MINUS_1), jnp.float32, minval=-1.0, maxval=1.0)

    ref = _circle_loss_ref(sp, sn, m=0.25, gamma=64.0, soft_margin=0.1)

    # Forced 128-lane tiles -> 3-step grid with a ragged last block: exercises
    # the init / accumulate / last-step-mask / finalize paths.
    out_small = circle_loss(sp, sn, m=0.25, gamma=64.0, soft_margin=0.1, tile_b=128)
    out_small = jax.block_until_ready(out_small)
    assert jnp.allclose(out_small, ref, rtol=1e-4, atol=1e-5), (out_small, ref)

    # Default byte-sized tiles (single ragged block at this small size).
    out = circle_loss(sp, sn, m=0.25, gamma=64.0, soft_margin=0.1)
    out = jax.block_until_ready(out)
    assert jnp.allclose(out, ref, rtol=1e-4, atol=1e-5), (out, ref)

    print("KERNEL_OK")
</pallas_src>

<mosaic_0001>
module attributes {stable_mosaic.version = 11 : i64} {
  func.func @_circle_loss_kernel(%arg0: i32, %arg1: memref<1x128xf32, #tpu.memory_space<vmem>>, %arg2: memref<16x128xf32, #tpu.memory_space<vmem>>, %arg3: memref<1xf32, #tpu.memory_space<smem>>, %arg4: memref<1x128xf32, #tpu.memory_space<vmem>>, %arg5: memref<1x128xf32, #tpu.memory_space<vmem>>, %arg6: memref<1x128xf32, #tpu.memory_space<vmem>>, %arg7: memref<1x128xf32, #tpu.memory_space<vmem>>, %arg8: memref<1x128xf32, #tpu.memory_space<vmem>>) attributes {dimension_semantics = [#tpu.dimension_semantics<arbitrary>], iteration_bounds = array<i64: 3>, scalar_prefetch = 0 : i64, scratch_operands = 5 : i64, tpu.core_type = #tpu.core_type<tc>, window_params = [{transform_indices = @transform_0, window_bounds = array<i64: 1, 128>}, {transform_indices = @transform_1, window_bounds = array<i64: 16, 128>}, {transform_indices = @transform_2, window_bounds = array<i64: 1>}]} {
    %c0_i32 = arith.constant 0 : i32
    %0 = arith.cmpi eq, %arg0, %c0_i32 : i32
    %1 = arith.extui %0 : i1 to i32
    %c0_i32_0 = arith.constant 0 : i32
    %2 = arith.cmpi ne, %1, %c0_i32_0 : i32
    scf.if %2 {
      %cst_35 = arith.constant 0.000000e+00 : f32
      %86 = vector.broadcast %cst_35 : f32 to vector<1x128xf32>
      %c0_36 = arith.constant 0 : index
      %c0_37 = arith.constant 0 : index
      %87 = vector.load %arg4[%c0_36, %c0_37] : memref<1x128xf32, #tpu.memory_space<vmem>>, vector<1x128xf32>
      tpu.vector_store %arg4[%c0_36, %c0_37], %86 {strides = array<i32>} : memref<1x128xf32, #tpu.memory_space<vmem>>, vector<1x128xf32>,
      %cst_38 = arith.constant 0.000000e+00 : f32
      %88 = vector.broadcast %cst_38 : f32 to vector<1x128xf32>
      %c0_39 = arith.constant 0 : index
      %c0_40 = arith.constant 0 : index
      %89 = vector.load %arg5[%c0_39, %c0_40] : memref<1x128xf32, #tpu.memory_space<vmem>>, vector<1x128xf32>
      tpu.vector_store %arg5[%c0_39, %c0_40], %88 {strides = array<i32>} : memref<1x128xf32, #tpu.memory_space<vmem>>, vector<1x128xf32>,
      %cst_41 = arith.constant 0.000000e+00 : f32
      %90 = vector.broadcast %cst_41 : f32 to vector<1x128xf32>
      %c0_42 = arith.constant 0 : index
      %c0_43 = arith.constant 0 : index
      %91 = vector.load %arg6[%c0_42, %c0_43] : memref<1x128xf32, #tpu.memory_space<vmem>>, vector<1x128xf32>
      tpu.vector_store %arg6[%c0_42, %c0_43], %90 {strides = array<i32>} : memref<1x128xf32, #tpu.memory_space<vmem>>, vector<1x128xf32>,
      %cst_44 = arith.constant 0.000000e+00 : f32
      %92 = vector.broadcast %cst_44 : f32 to vector<1x128xf32>
      %c0_45 = arith.constant 0 : index
      %c0_46 = arith.constant 0 : index
      %93 = vector.load %arg7[%c0_45, %c0_46] : memref<1x128xf32, #tpu.memory_space<vmem>>, vector<1x128xf32>
      tpu.vector_store %arg7[%c0_45, %c0_46], %92 {strides = array<i32>} : memref<1x128xf32, #tpu.memory_space<vmem>>, vector<1x128xf32>,
      %cst_47 = arith.constant 0.000000e+00 : f32
      %94 = vector.broadcast %cst_47 : f32 to vector<1x128xf32>
      %c0_48 = arith.constant 0 : index
      %c0_49 = arith.constant 0 : index
      %95 = vector.load %arg8[%c0_48, %c0_49] : memref<1x128xf32, #tpu.memory_space<vmem>>, vector<1x128xf32>
      tpu.vector_store %arg8[%c0_48, %c0_49], %94 {strides = array<i32>} : memref<1x128xf32, #tpu.memory_space<vmem>>, vector<1x128xf32>,
    } else {
    }
    %c0 = arith.constant 0 : index
    %c0_1 = arith.constant 0 : index
    %3 = vector.load %arg1[%c0, %c0_1] : memref<1x128xf32, #tpu.memory_space<vmem>>, vector<1x128xf32>
    %c0_2 = arith.constant 0 : index
    %c0_3 = arith.constant 0 : index
    %4 = vector.load %arg2[%c0_2, %c0_3] : memref<16x128xf32, #tpu.memory_space<vmem>>, vector<16x128xf32>
    %cst = arith.constant 0.000000e+00 : f32
    %5 = vector.broadcast %cst : f32 to vector<1x128xf32>
    %6 = arith.subf %5, %3 : vector<1x128xf32>
    %cst_4 = arith.constant 1.250000e+00 : f32
    %7 = vector.broadcast %cst_4 : f32 to vector<1x128xf32>
    %8 = arith.addf %6, %7 : vector<1x128xf32>
    %cst_5 = arith.constant 0.000000e+00 : f32
    %9 = vector.broadcast %cst_5 : f32 to vector<1x128xf32>
    %10 = arith.maximumf %8, %9 : vector<1x128xf32>
    %cst_6 = arith.constant 2.500000e-01 : f32
    %11 = vector.broadcast %cst_6 : f32 to vector<16x128xf32>
    %12 = arith.addf %4, %11 : vector<16x128xf32>
    %cst_7 = arith.constant 0.000000e+00 : f32
    %13 = vector.broadcast %cst_7 : f32 to vector<16x128xf32>
    %14 = arith.maximumf %12, %13 : vector<16x128xf32>
    %cst_8 = arith.constant 8.000000e-01 : f32
    %15 = vector.broadcast %cst_8 : f32 to vector<1x128xf32>
    %16 = arith.subf %3, %15 : vector<1x128xf32>
    %cst_9 = arith.constant 5.000000e-01 : f32
    %17 = vector.broadcast %cst_9 : f32 to vector<1x128xf32>
    %18 = arith.mulf %17, %16 : vector<1x128xf32>
    %19 = math.tanh %18 : vector<1x128xf32>
    %cst_10 = arith.constant 1.000000e+00 : f32
    %20 = vector.broadcast %cst_10 : f32 to vector<1x128xf32>
    %21 = arith.addf %19, %20 : vector<1x128xf32>
    %cst_11 = arith.constant 5.000000e-01 : f32
    %22 = vector.broadcast %cst_11 : f32 to vector<1x128xf32>
    %23 = arith.mulf %22, %21 : vector<1x128xf32>
    %cst_12 = arith.constant 1.000000e-01 : f32
    %24 = vector.broadcast %cst_12 : f32 to vector<1x128xf32>
    %25 = arith.mulf %24, %23 : vector<1x128xf32>
    %cst_13 = arith.constant 7.500000e-01 : f32
    %26 = vector.broadcast %cst_13 : f32 to vector<1x128xf32>
    %27 = arith.addf %26, %25 : vector<1x128xf32>
    %cst_14 = arith.constant 0.000000e+00 : f32
    %28 = vector.broadcast %cst_14 : f32 to vector<16x128xf32>
    %29 = arith.subf %28, %4 : vector<16x128xf32>
    %cst_15 = arith.constant 2.000000e-01 : f32
    %30 = vector.broadcast %cst_15 : f32 to vector<16x128xf32>
    %31 = arith.subf %29, %30 : vector<16x128xf32>
    %cst_16 = arith.constant 5.000000e-01 : f32
    %32 = vector.broadcast %cst_16 : f32 to vector<16x128xf32>
    %33 = arith.mulf %32, %31 : vector<16x128xf32>
    %34 = math.tanh %33 : vector<16x128xf32>
    %cst_17 = arith.constant 1.000000e+00 : f32
    %35 = vector.broadcast %cst_17 : f32 to vector<16x128xf32>
    %36 = arith.addf %34, %35 : vector<16x128xf32>
    %cst_18 = arith.constant 5.000000e-01 : f32
    %37 = vector.broadcast %cst_18 : f32 to vector<16x128xf32>
    %38 = arith.mulf %37, %36 : vector<16x128xf32>
    %cst_19 = arith.constant 1.000000e-01 : f32
    %39 = vector.broadcast %cst_19 : f32 to vector<16x128xf32>
    %40 = arith.mulf %39, %38 : vector<16x128xf32>
    %cst_20 = arith.constant 2.500000e-01 : f32
    %41 = vector.broadcast %cst_20 : f32 to vector<16x128xf32>
    %42 = arith.subf %41, %40 : vector<16x128xf32>
    %cst_21 = arith.constant 0.000000e+00 : f32
    %43 = vector.broadcast %cst_21 : f32 to vector<1x128xf32>
    %44 = arith.subf %43, %10 : vector<1x128xf32>
    %45 = arith.subf %3, %27 : vector<1x128xf32>
    %46 = arith.mulf %44, %45 : vector<1x128xf32>
    %cst_22 = arith.constant 6.400000e+01 : f32
    %47 = vector.broadcast %cst_22 : f32 to vector<1x128xf32>
    %48 = arith.mulf %46, %47 : vector<1x128xf32>
    %49 = arith.subf %4, %42 : vector<16x128xf32>
    %50 = arith.mulf %14, %49 : vector<16x128xf32>
    %cst_23 = arith.constant 6.400000e+01 : f32
    %51 = vector.broadcast %cst_23 : f32 to vector<16x128xf32>
    %52 = arith.mulf %50, %51 : vector<16x128xf32>
    %cst_24 = arith.constant dense<0xFF800000> : vector<128xf32>
    %53 = vector.multi_reduction <maximumf>, %52, %cst_24 [0] : vector<16x128xf32> to vector<128xf32>
    %54 = vector.shape_cast %53 : vector<128xf32> to vector<1x128xf32>
    %55 = vector.broadcast %54 : vector<1x128xf32> to vector<16x128xf32>
    %56 = arith.subf %52, %55 : vector<16x128xf32>
    %57 = math.exp %56 : vector<16x128xf32>
    %cst_25 = arith.constant dense<0.000000e+00> : vector<128xf32>
    %58 = vector.multi_reduction <add>, %57, %cst_25 [0] : vector<16x128xf32> to vector<128xf32>
    %59 = vector.shape_cast %58 : vector<128xf32> to vector<1x128xf32>
    %60 = math.log %59 : vector<1x128xf32>
    %61 = arith.addf %60, %54 : vector<1x128xf32>
    %62 = arith.addf %61, %48 : vector<1x128xf32>
    %cst_26 = arith.constant 0.000000e+00 : f32
    %63 = vector.broadcast %cst_26 : f32 to vector<1x128xf32>
    %64 = arith.maximumf %62, %63 : vector<1x128xf32>
    %65 = math.absf %62 : vector<1x128xf32>
    %cst_27 = arith.constant 0.000000e+00 : f32
    %66 = vector.broadcast %cst_27 : f32 to vector<1x128xf32>
    %67 = arith.subf %66, %65 : vector<1x128xf32>
    %68 = math.exp %67 : vector<1x128xf32>
    %69 = math.log1p %68 : vector<1x128xf32>
    %70 = arith.addf %64, %69 : vector<1x128xf32>
    %71 = arith.mulf %3, %3 : vector<1x128xf32>
    %cst_28 = arith.constant dense<0.000000e+00> : vector<128xf32>
    %72 = vector.multi_reduction <add>, %4, %cst_28 [0] : vector<16x128xf32> to vector<128xf32>
    %73 = vector.shape_cast %72 : vector<128xf32> to vector<1x128xf32>
    %74 = arith.mulf %4, %4 : vector<16x128xf32>
    %cst_29 = arith.constant dense<0.000000e+00> : vector<128xf32>
    %75 = vector.multi_reduction <add>, %74, %cst_29 [0] : vector<16x128xf32> to vector<128xf32>
    %76 = vector.shape_cast %75 : vector<128xf32> to vector<1x128xf32>
    %c2_i32 = arith.constant 2 : i32
    %77 = arith.cmpi slt, %arg0, %c2_i32 : i32
    %78 = arith.extui %77 : i1 to i32
    %c0_i32_30 = arith.constant 0 : i32
    %79 = arith.cmpi ne, %78, %c0_i32_30 : i32
    scf.if %79 {
      %c0_35 = arith.constant 0 : index
      %c0_36 = arith.constant 0 : index
      %86 = vector.load %arg4[%c0_35, %c0_36] : memref<1x128xf32, #tpu.memory_space<vmem>>, vector<1x128xf32>
      %87 = arith.addf %86, %70 : vector<1x128xf32>
      %c0_37 = arith.constant 0 : index
      %c0_38 = arith.constant 0 : index
      %88 = vector.load %arg4[%c0_37, %c0_38] : memref<1x128xf32, #tpu.memory_space<vmem>>, vector<1x128xf32>
      tpu.vector_store %arg4[%c0_37, %c0_38], %87 {strides = array<i32>} : memref<1x128xf32, #tpu.memory_space<vmem>>, vector<1x128xf32>,
      %c0_39 = arith.constant 0 : index
      %c0_40 = arith.constant 0 : index
      %89 = vector.load %arg5[%c0_39, %c0_40] : memref<1x128xf32, #tpu.memory_space<vmem>>, vector<1x128xf32>
      %90 = arith.addf %89, %3 : vector<1x128xf32>
      %c0_41 = arith.constant 0 : index
      %c0_42 = arith.constant 0 : index
      %91 = vector.load %arg5[%c0_41, %c0_42] : memref<1x128xf32, #tpu.memory_space<vmem>>, vector<1x128xf32>
      tpu.vector_store %arg5[%c0_41, %c0_42], %90 {strides = array<i32>} : memref<1x128xf32, #tpu.memory_space<vmem>>, vector<1x128xf32>,
      %c0_43 = arith.constant 0 : index
      %c0_44 = arith.constant 0 : index
      %92 = vector.load %arg6[%c0_43, %c0_44] : memref<1x128xf32, #tpu.memory_space<vmem>>, vector<1x128xf32>
      %93 = arith.addf %92, %71 : vector<1x128xf32>
      %c0_45 = arith.constant 0 : index
      %c0_46 = arith.constant 0 : index
      %94 = vector.load %arg6[%c0_45, %c0_46] : memref<1x128xf32, #tpu.memory_space<vmem>>, vector<1x128xf32>
      tpu.vector_store %arg6[%c0_45, %c0_46], %93 {strides = array<i32>} : memref<1x128xf32, #tpu.memory_space<vmem>>, vector<1x128xf32>,
      %c0_47 = arith.constant 0 : index
      %c0_48 = arith.constant 0 : index
      %95 = vector.load %arg7[%c0_47, %c0_48] : memref<1x128xf32, #tpu.memory_space<vmem>>, vector<1x128xf32>
      %96 = arith.addf %95, %73 : vector<1x128xf32>
      %c0_49 = arith.constant 0 : index
      %c0_50 = arith.constant 0 : index
      %97 = vector.load %arg7[%c0_49, %c0_50] : memref<1x128xf32, #tpu.memory_space<vmem>>, vector<1x128xf32>
      tpu.vector_store %arg7[%c0_49, %c0_50], %96 {strides = array<i32>} : memref<1x128xf32, #tpu.memory_space<vmem>>, vector<1x128xf32>,
      %c0_51 = arith.constant 0 : index
      %c0_52 = arith.constant 0 : index
      %98 = vector.load %arg8[%c0_51, %c0_52] : memref<1x128xf32, #tpu.memory_space<vmem>>, vector<1x128xf32>
      %99 = arith.addf %98, %76 : vector<1x128xf32>
      %c0_53 = arith.constant 0 : index
      %c0_54 = arith.constant 0 : index
      %100 = vector.load %arg8[%c0_53, %c0_54] : memref<1x128xf32, #tpu.memory_space<vmem>>, vector<1x128xf32>
      tpu.vector_store %arg8[%c0_53, %c0_54], %99 {strides = array<i32>} : memref<1x128xf32, #tpu.memory_space<vmem>>, vector<1x128xf32>,
    } else {
    }
    %c2_i32_31 = arith.constant 2 : i32
    %80 = arith.cmpi eq, %arg0, %c2_i32_31 : i32
    %81 = arith.extui %80 : i1 to i32
    %c0_i32_32 = arith.constant 0 : i32
    %82 = arith.cmpi ne, %81, %c0_i32_32 : i32
    scf.if %82 {
      %86 = tpu.iota {dimensions = array<i32: 1>} : vector<1x128xi32>
      %c128_i32 = arith.constant 128 : i32
      %87 = arith.muli %arg0, %c128_i32 : i32
      %88 = vector.broadcast %87 : i32 to vector<1x128xi32>
      %89 = arith.addi %88, %86 : vector<1x128xi32>
      %c300_i32 = arith.constant 300 : i32
      %90 = vector.broadcast %c300_i32 : i32 to vector<1x128xi32>
      %91 = arith.cmpi slt, %89, %90 : vector<1x128xi32>
      %cst_35 = arith.constant 0.000000e+00 : f32
      %92 = vector.broadcast %cst_35 : f32 to vector<1x128xf32>
      %93 = arith.select %91, %70, %92 : vector<1x128xi1>, vector<1x128xf32>
      %cst_36 = arith.constant 0.000000e+00 : f32
      %94 = vector.broadcast %cst_36 : f32 to vector<1x128xf32>
      %95 = arith.select %91, %3, %94 : vector<1x128xi1>, vector<1x128xf32>
      %cst_37 = arith.constant 0.000000e+00 : f32
      %96 = vector.broadcast %cst_37 : f32 to vector<1x128xf32>
      %97 = arith.select %91, %71, %96 : vector<1x128xi1>, vector<1x128xf32>
      %cst_38 = arith.constant 0.000000e+00 : f32
      %98 = vector.broadcast %cst_38 : f32 to vector<1x128xf32>
      %99 = arith.select %91, %73, %98 : vector<1x128xi1>, vector<1x128xf32>
      %cst_39 = arith.constant 0.000000e+00 : f32
      %100 = vector.broadcast %cst_39 : f32 to vector<1x128xf32>
      %101 = arith.select %91, %76, %100 : vector<1x128xi1>, vector<1x128xf32>
      %c0_40 = arith.constant 0 : index
      %c0_41 = arith.constant 0 : index
      %102 = vector.load %arg4[%c0_40, %c0_41] : memref<1x128xf32, #tpu.memory_space<vmem>>, vector<1x128xf32>
      %103 = arith.addf %102, %93 : vector<1x128xf32>
      %c0_42 = arith.constant 0 : index
      %c0_43 = arith.constant 0 : index
      %104 = vector.load %arg4[%c0_42, %c0_43] : memref<1x128xf32, #tpu.memory_space<vmem>>, vector<1x128xf32>
      tpu.vector_store %arg4[%c0_42, %c0_43], %103 {strides = array<i32>} : memref<1x128xf32, #tpu.memory_space<vmem>>, vector<1x128xf32>,
      %c0_44 = arith.constant 0 : index
      %c0_45 = arith.constant 0 : index
      %105 = vector.load %arg5[%c0_44, %c0_45] : memref<1x128xf32, #tpu.memory_space<vmem>>, vector<1x128xf32>
      %106 = arith.addf %105, %95 : vector<1x128xf32>
      %c0_46 = arith.constant 0 : index
      %c0_47 = arith.constant 0 : index
      %107 = vector.load %arg5[%c0_46, %c0_47] : memref<1x128xf32, #tpu.memory_space<vmem>>, vector<1x128xf32>
      tpu.vector_store %arg5[%c0_46, %c0_47], %106 {strides = array<i32>} : memref<1x128xf32, #tpu.memory_space<vmem>>, vector<1x128xf32>,
      %c0_48 = arith.constant 0 : index
      %c0_49 = arith.constant 0 : index
      %108 = vector.load %arg6[%c0_48, %c0_49] : memref<1x128xf32, #tpu.memory_space<vmem>>, vector<1x128xf32>
      %109 = arith.addf %108, %97 : vector<1x128xf32>
      %c0_50 = arith.constant 0 : index
      %c0_51 = arith.constant 0 : index
      %110 = vector.load %arg6[%c0_50, %c0_51] : memref<1x128xf32, #tpu.memory_space<vmem>>, vector<1x128xf32>
      tpu.vector_store %arg6[%c0_50, %c0_51], %109 {strides = array<i32>} : memref<1x128xf32, #tpu.memory_space<vmem>>, vector<1x128xf32>,
      %c0_52 = arith.constant 0 : index
      %c0_53 = arith.constant 0 : index
      %111 = vector.load %arg7[%c0_52, %c0_53] : memref<1x128xf32, #tpu.memory_space<vmem>>, vector<1x128xf32>
      %112 = arith.addf %111, %99 : vector<1x128xf32>
      %c0_54 = arith.constant 0 : index
      %c0_55 = arith.constant 0 : index
      %113 = vector.load %arg7[%c0_54, %c0_55] : memref<1x128xf32, #tpu.memory_space<vmem>>, vector<1x128xf32>
      tpu.vector_store %arg7[%c0_54, %c0_55], %112 {strides = array<i32>} : memref<1x128xf32, #tpu.memory_space<vmem>>, vector<1x128xf32>,
      %c0_56 = arith.constant 0 : index
      %c0_57 = arith.constant 0 : index
      %114 = vector.load %arg8[%c0_56, %c0_57] : memref<1x128xf32, #tpu.memory_space<vmem>>, vector<1x128xf32>
      %115 = arith.addf %114, %101 : vector<1x128xf32>
      %c0_58 = arith.constant 0 : index
      %c0_59 = arith.constant 0 : index
      %116 = vector.load %arg8[%c0_58, %c0_59] : memref<1x128xf32, #tpu.memory_space<vmem>>, vector<1x128xf32>
      tpu.vector_store %arg8[%c0_58, %c0_59], %115 {strides = array<i32>} : memref<1x128xf32, #tpu.memory_space<vmem>>, vector<1x128xf32>,
    } else {
    }
    %c2_i32_33 = arith.constant 2 : i32
    %83 = arith.cmpi eq, %arg0, %c2_i32_33 : i32
    %84 = arith.extui %83 : i1 to i32
    %c0_i32_34 = arith.constant 0 : i32
    %85 = arith.cmpi ne, %84, %c0_i32_34 : i32
    scf.if %85 {
      %c0_35 = arith.constant 0 : index
      %c0_36 = arith.constant 0 : index
      %86 = vector.load %arg4[%c0_35, %c0_36] : memref<1x128xf32, #tpu.memory_space<vmem>>, vector<1x128xf32>
      %87 = vector.shape_cast %86 : vector<1x128xf32> to vector<1x1x128xf32>
      %cst_37 = arith.constant dense<0.000000e+00> : vector<1xf32>
      %88 = vector.multi_reduction <add>, %87, %cst_37 [1, 2] : vector<1x1x128xf32> to vector<1xf32>
      %89 = vector.shape_cast %88 : vector<1xf32> to vector<1x1x1xf32>
      %90 = vector.extract %89[0, 0, 0] : f32 from vector<1x1x1xf32>
      %c0_38 = arith.constant 0 : index
      %c0_39 = arith.constant 0 : index
      %91 = vector.load %arg5[%c0_38, %c0_39] : memref<1x128xf32, #tpu.memory_space<vmem>>, vector<1x128xf32>
      %92 = vector.shape_cast %91 : vector<1x128xf32> to vector<1x1x128xf32>
      %cst_40 = arith.constant dense<0.000000e+00> : vector<1xf32>
      %93 = vector.multi_reduction <add>, %92, %cst_40 [1, 2] : vector<1x1x128xf32> to vector<1xf32>
      %94 = vector.shape_cast %93 : vector<1xf32> to vector<1x1x1xf32>
      %95 = vector.extract %94[0, 0, 0] : f32 from vector<1x1x1xf32>
      %c0_41 = arith.constant 0 : index
      %c0_42 = arith.constant 0 : index
      %96 = vector.load %arg6[%c0_41, %c0_42] : memref<1x128xf32, #tpu.memory_space<vmem>>, vector<1x128xf32>
      %97 = vector.shape_cast %96 : vector<1x128xf32> to vector<1x1x128xf32>
      %cst_43 = arith.constant dense<0.000000e+00> : vector<1xf32>
      %98 = vector.multi_reduction <add>, %97, %cst_43 [1, 2] : vector<1x1x128xf32> to vector<1xf32>
      %99 = vector.shape_cast %98 : vector<1xf32> to vector<1x1x1xf32>
      %100 = vector.extract %99[0, 0, 0] : f32 from vector<1x1x1xf32>
      %c0_44 = arith.constant 0 : index
      %c0_45 = arith.constant 0 : index
      %101 = vector.load %arg7[%c0_44, %c0_45] : memref<1x128xf32, #tpu.memory_space<vmem>>, vector<1x128xf32>
      %102 = vector.shape_cast %101 : vector<1x128xf32> to vector<1x1x128xf32>
      %cst_46 = arith.constant dense<0.000000e+00> : vector<1xf32>
      %103 = vector.multi_reduction <add>, %102, %cst_46 [1, 2] : vector<1x1x128xf32> to vector<1xf32>
      %104 = vector.shape_cast %103 : vector<1xf32> to vector<1x1x1xf32>
      %105 = vector.extract %104[0, 0, 0] : f32 from vector<1x1x1xf32>
      %c0_47 = arith.constant 0 : index
      %c0_48 = arith.constant 0 : index
      %106 = vector.load %arg8[%c0_47, %c0_48] : memref<1x128xf32, #tpu.memory_space<vmem>>, vector<1x128xf32>
      %107 = vector.shape_cast %106 : vector<1x128xf32> to vector<1x1x128xf32>
      %cst_49 = arith.constant dense<0.000000e+00> : vector<1xf32>
      %108 = vector.multi_reduction <add>, %107, %cst_49 [1, 2] : vector<1x1x128xf32> to vector<1xf32>
      %109 = vector.shape_cast %108 : vector<1xf32> to vector<1x1x1xf32>
      %110 = vector.extract %109[0, 0, 0] : f32 from vector<1x1x1xf32>
      %cst_50 = arith.constant 0.00333333341 : f32
      %111 = arith.mulf %90, %cst_50 : f32
      %cst_51 = arith.constant 0.00333333341 : f32
      %112 = arith.mulf %95, %cst_51 : f32
      %cst_52 = arith.constant 2.08333338E-4 : f32
      %113 = arith.mulf %105, %cst_52 : f32
      %cst_53 = arith.constant 3.000000e+02 : f32
      %114 = arith.mulf %cst_53, %112 : f32
      %115 = arith.mulf %114, %112 : f32
      %116 = arith.subf %100, %115 : f32
      %cst_54 = arith.constant 0.00334448158 : f32
      %117 = arith.mulf %116, %cst_54 : f32
      %cst_55 = arith.constant 4.800000e+03 : f32
      %118 = arith.mulf %cst_55, %113 : f32
      %119 = arith.mulf %118, %113 : f32
      %120 = arith.subf %110, %119 : f32
      %cst_56 = arith.constant 2.08376747E-4 : f32
      %121 = arith.mulf %120, %cst_56 : f32
      %cst_57 = arith.constant 0.000000e+00 : f32
      %122 = arith.maximumf %117, %cst_57 : f32
      %123 = math.sqrt %122 : f32
      %cst_58 = arith.constant 0.000000e+00 : f32
      %124 = arith.maximumf %121, %cst_58 : f32
      %125 = math.sqrt %124 : f32
      %126 = arith.addf %123, %125 : f32
      %cst_59 = arith.constant 1.000000e-01 : f32
      %127 = arith.mulf %cst_59, %126 : f32
      %128 = arith.addf %111, %127 : f32
      %c0_60 = arith.constant 0 : index
      %129 = memref.load %arg3[%c0_60] : memref<1xf32, #tpu.memory_space<smem>>
      memref.store %128, %arg3[%c0_60] : memref<1xf32, #tpu.memory_space<smem>>
    } else {
    }
    return
  }
  func.func @transform_0(%arg0: i32) -> (i32, i32) {
    %c0_i32 = arith.constant 0 : i32
    %c0_i32_0 = arith.constant 0 : i32
    return %c0_i32, %arg0 : i32, i32
  }
  func.func @transform_1(%arg0: i32) -> (i32, i32) {
    %c0_i32 = arith.constant 0 : i32
    %c0_i32_0 = arith.constant 0 : i32
    return %c0_i32, %arg0 : i32, i32
  }
  func.func @transform_2(%arg0: i32) -> i32 {
    %c0_i32 = arith.constant 0 : i32
    %c0_i32_0 = arith.constant 0 : i32
    return %c0_i32 : i32
  }
}

</mosaic_0001>

<llo_original>
// kernel: tpu_custom_call.1
$region0: #{tpu_custom_call.1}
  #allocation0 [shape = 'u32[]', space=smem, size = 0x4, offset = 0x4, fixed_abs, tag = 'smem constant byte address 0x4 - core index']
  #allocation1 [shape = 'u32[144,128]{1,0:T(1,128)}', space=vmem, size = 0x12000, scoped, tag = 'internal scratch']
  #allocation2 [shape = 'f32[1,128]{1,0:T(1,128)}', space=vmem, size = 0x200, scoped, tag = 'scratch operand']
  #allocation3 [shape = 'f32[1,128]{1,0:T(1,128)}', space=vmem, size = 0x200, scoped, tag = 'scratch operand']
  #allocation4 [shape = 'f32[1,128]{1,0:T(1,128)}', space=vmem, size = 0x200, scoped, tag = 'scratch operand']
  #allocation5 [shape = 'f32[1,128]{1,0:T(1,128)}', space=vmem, size = 0x200, scoped, tag = 'scratch operand']
  #allocation6 [shape = 'f32[1,128]{1,0:T(1,128)}', space=vmem, size = 0x200, scoped, tag = 'scratch operand']
  %s0 = inlined_call_operand.hbm [shape: f32[1,300], index: 0, kind: input, shape index: {}]
  %s1 = inlined_call_operand.hbm [shape: f32[16,300], index: 1, kind: input, shape index: {}]
  %s2 = inlined_call_operand.hbm [shape: f32[1], index: 2, kind: output, shape index: {}]
  %s3 = sld [smem:[#allocation0]]
  $region61: #{tpu_custom_call.1} parent=0
    _
  %s5 = ssub.s32 1, %s3
  %s6 = scalar_select 0, %s5, %s3
  $region1: #{tpu_custom_call.1} parent=0
    #allocation7 [shape = 'u8[1024]{0}', space=vmem, size = 0x400, scoped, tag = 'input window, operand 0']
    #allocation8 [shape = 's32[2]{0}', space=sflag, size = 0x8, scoped, tag = 'scoped memory for tpu_custom_call.1']
    #allocation9 [shape = 's32[2]{0}', space=sflag, size = 0x8, scoped, tag = 'scoped memory for tpu_custom_call.1']
    #allocation10 [shape = 'u8[16384]{0}', space=vmem, size = 0x4000, scoped, tag = 'input window, operand 1']
    #allocation11 [shape = 's32[2]{0}', space=sflag, size = 0x8, scoped, tag = 'scoped memory for tpu_custom_call.1']
    #allocation12 [shape = 'u8[512]{0}', space=smem, size = 0x200, scoped, tag = 'output window, operand 0, single buffered']
    %7 = vsyncpa [#allocation8], 0
    %s8 = scalar_lea.sflag [#allocation8], 1
    %9 = vsyncpa %s8, 0
    %10 = vsyncpa [#allocation11], 0
    %s11 = scalar_lea.sflag [#allocation11], 1
    %12 = vsyncpa %s11, 0
    %13 = vsyncpa [#allocation9], 0
    loop: start=0, step=1, limit=5
    $region2: #{tpu_custom_call.1} parent=1 // loop_pre_header
      _
    $region3: #{tpu_custom_call.1} parent=1 // loop_header
      %s15 = sphi 0, %s19
      %p16 = scmp.ge.s32.totalorder %s15, 5
      %s25 = sphi 0, %s27
      %s28 = sphi 0, %s25
      %s29 = sphi 0, %s28
      %s45 = sphi 0, %s29
      %s51 = sphi 0, %s53
      %s54 = sphi 0, %s51
      %s55 = sphi 0, %s54
      %s71 = sphi 0, %s55
      %s75 = sphi 0, %s75
      %s77 = sphi 0, %s75
      %s78 = sphi 0, %s77
      %s92 = sphi 0, %s78
    $region4: #{tpu_custom_call.1} parent=1 // loop_header_branch
      %18 = sbr.rel (%p16) target = $region8
    $region5: #{tpu_custom_call.1} parent=1 // loop_body
      %s20 = ssub.s32 %s15, 1
      %s21 = ssub.s32 %s15, 2
      %s22 = sadd.s32 %s15, 1
      %s23 = ssub.s32 %s15, %s22
      %p24 = scmp.eq.s32.totalorder %s23, 0
      %s26 = sadd.s32 %s25, 1
      %s27 = scalar_select %p24, %s25, %s26
      %p30 = pneg %p24
      %p31 = scmp.eq.s32.totalorder %s15, 2
      %p32 = por %p30, %p31
      %p33 = scmp.ne.s32.totalorder %s25, %s28
      %p34 = scmp.eq.s32.totalorder %s15, 0
      %p35 = por %p33, %p34
      %p36 = scmp.ne.s32.totalorder %s25, %s28
      %p37 = scmp.eq.s32.totalorder %s20, 2
      %p38 = por %p36, %p37
      %p39 = scmp.ne.s32.totalorder %s28, %s29
      %p40 = scmp.eq.s32.totalorder %s20, 0
      %p41 = por %p39, %p40
      %p42 = scmp.ne.s32.totalorder %s28, %s29
      %p43 = scmp.eq.s32.totalorder %s21, 2
      %p44 = por %p42, %p43
      %p46 = scmp.ne.s32.totalorder %s29, %s45
      %p47 = scmp.eq.s32.totalorder %s21, 0
      %p48 = por %p46, %p47
      %s49 = ssub.s32 %s15, %s22
      %p50 = scmp.eq.s32.totalorder %s49, 0
      %s52 = sadd.s32 %s51, 1
      %s53 = scalar_select %p50, %s51, %s52
      %p56 = pneg %p50
      %p57 = scmp.eq.s32.totalorder %s15, 2
      %p58 = por %p56, %p57
      %p59 = scmp.ne.s32.totalorder %s51, %s54
      %p60 = scmp.eq.s32.totalorder %s15, 0
      %p61 = por %p59, %p60
      %p62 = scmp.ne.s32.totalorder %s51, %s54
      %p63 = scmp.eq.s32.totalorder %s20, 2
      %p64 = por %p62, %p63
      %p65 = scmp.ne.s32.totalorder %s54, %s55
      %p66 = scmp.eq.s32.totalorder %s20, 0
      %p67 = por %p65, %p66
      %p68 = scmp.ne.s32.totalorder %s54, %s55
      %p69 = scmp.eq.s32.totalorder %s21, 2
      %p70 = por %p68, %p69
      %p72 = scmp.ne.s32.totalorder %s55, %s71
      %p73 = scmp.eq.s32.totalorder %s21, 0
      %p74 = por %p72, %p73
      %s76 = sadd.s32 %s75, 1
      %p79 = scmp.eq.s32.totalorder %s15, 2
      %p80 = scmp.ne.s32.totalorder %s75, %s77
      %p81 = scmp.eq.s32.totalorder %s15, 0
      %p82 = por %p80, %p81
      %p83 = scmp.ne.s32.totalorder %s75, %s77
      %p84 = scmp.eq.s32.totalorder %s20, 2
      %p85 = por %p83, %p84
      %p86 = scmp.ne.s32.totalorder %s77, %s78
      %p87 = scmp.eq.s32.totalorder %s20, 0
      %p88 = por %p86, %p87
      %p89 = scmp.ne.s32.totalorder %s77, %s78
      %p90 = scmp.eq.s32.totalorder %s21, 2
      %p91 = por %p89, %p90
      %p93 = scmp.ne.s32.totalorder %s78, %s92
      %p94 = scmp.eq.s32.totalorder %s21, 0
      %p95 = por %p93, %p94
      %p96 = scmp.le.s32.totalorder 1, %s15
      %p97 = scmp.lt.s32.totalorder %s15, 4
      %p98 = pnand %p96, %p97
      %p99 = pneg %p98
      // Predicated region
      $region9: #{tpu_custom_call.1} parent=5 // pred_check
        _
      $region10: #{tpu_custom_call.1} parent=5 // pred_check_branch
        %101 = sbr.rel (%p98) target = $region12
      $region11: #{tpu_custom_call.1} parent=5 // pred_region
        %s102 = ssub.s32 %s15, 1
      $region12: #{tpu_custom_call.1} parent=5 // pred_fallthru
        _
      %p103 = scmp.lt.s32.totalorder %s15, 3
      // Predicated region
      $region13: #{tpu_custom_call.1} parent=5 // pred_check
        %p104 = pneg %p103
      $region14: #{tpu_custom_call.1} parent=5 // pred_check_branch
        %106 = sbr.rel (%p104) target = $region16
      $region15: #{tpu_custom_call.1} parent=5 // pred_region
        // Predicated region
        $region17: #{tpu_custom_call.1} parent=15 // pred_check
          %p107 = pneg %p35
        $region18: #{tpu_custom_call.1} parent=15 // pred_check_branch
          %109 = sbr.rel (%p107) target = $region20
        $region19: #{tpu_custom_call.1} parent=15 // pred_region
          %s110 = sand.u32 %s25, 1
          %s111 = scalar_lea.sflag [#allocation8], %s110
          %s112 = sand.u32 %s25, 1
          %s113 = scalar_lea.vmem [#allocation7], %s112
          %s115 = ssub.s32 16, 16
          %116 = vsyncadd %s111, %s115
          %s117 = smul.addr %s15, 16
          %s118 = scalar_lea.hbm %s0, %s117
          %s120 = sshll.u32 %s113, 4
          %s121 = int_to_ptr.vmem [resolvable:$true] %s120
          %123 = dma.hbm_to_vmem [thread:$0]  %s118, 16, %s121, %s111
        $region20: #{tpu_custom_call.1} parent=15 // pred_fallthru
          _
        // Predicated region
        $region21: #{tpu_custom_call.1} parent=15 // pred_check
          %p124 = pneg %p61
        $region22: #{tpu_custom_call.1} parent=15 // pred_check_branch
          %126 = sbr.rel (%p124) target = $region24
        $region23: #{tpu_custom_call.1} parent=15 // pred_region
          %s127 = sand.u32 %s51, 1
          %s128 = scalar_lea.sflag [#allocation11], %s127
          %s129 = sand.u32 %s51, 1
          %s130 = smul.addr %s129, 16
          %s131 = scalar_lea.vmem [#allocation10], %s130
          %s133 = ssub.s32 256, 256
          %134 = vsyncadd %s128, %s133
          %s135 = smul.addr %s15, 128
          %s136 = scalar_lea.hbm %s1, %s135
          %s137 = sshll.u32 %s131, 4
          %s138 = int_to_ptr.vmem [resolvable:$true] %s137
          %143 = dma.hbm_to_vmem [thread:$0]  %s136, 256, %s138, %s128, 384, 128, 8
        $region24: #{tpu_custom_call.1} parent=15 // pred_fallthru
          _
      $region16: #{tpu_custom_call.1} parent=5 // pred_fallthru
        _
      %p144 = scmp.le.s32.totalorder 1, %s15
      %p145 = scmp.lt.s32.totalorder %s15, 4
      %p146 = pnand %p144, %p145
      %p147 = pneg %p146
      // Predicated region
      $region25: #{tpu_custom_call.1} parent=5 // pred_check
        _
      $region26: #{tpu_custom_call.1} parent=5 // pred_check_branch
        %149 = sbr.rel (%p146) target = $region28
      $region27: #{tpu_custom_call.1} parent=5 // pred_region
        %s150 = ssub.s32 %s15, 1
        %s151 = sand.u32 %s28, 1
        %s152 = scalar_lea.sflag [#allocation8], %s151
        %s153 = sand.u32 %s28, 1
        %s154 = scalar_lea.vmem [#allocation7], %s153
        // Predicated region
        $region29: #{tpu_custom_call.1} parent=27 // pred_check
          %p155 = pneg %p41
        $region30: #{tpu_custom_call.1} parent=27 // pred_check_branch
          %157 = sbr.rel (%p155) target = $region32
        $region31: #{tpu_custom_call.1} parent=27 // pred_region
          %158 = dma.done %s152, 16
        $region32: #{tpu_custom_call.1} parent=27 // pred_fallthru
          _
        %s159 = sand.u32 %s54, 1
        %s160 = scalar_lea.sflag [#allocation11], %s159
        %s161 = sand.u32 %s54, 1
        %s162 = smul.addr %s161, 16
        %s163 = scalar_lea.vmem [#allocation10], %s162
        // Predicated region
        $region33: #{tpu_custom_call.1} parent=27 // pred_check
          %p164 = pneg %p67
        $region34: #{tpu_custom_call.1} parent=27 // pred_check_branch
          %166 = sbr.rel (%p164) target = $region36
        $region35: #{tpu_custom_call.1} parent=27 // pred_region
          %167 = dma.done %s160, 256
        $region36: #{tpu_custom_call.1} parent=27 // pred_fallthru
          _
        %s168 = sand.u32 %s28, 1
        %s169 = scalar_lea.sflag [#allocation8], %s168
        %s170 = sand.u32 %s28, 1
        %s171 = scalar_lea.vmem [#allocation7], %s170
        %p172 = pneg %p41
        %p173 = pneg %p38
        %s174 = sand.u32 %s54, 1
        %s175 = scalar_lea.sflag [#allocation11], %s174
        %s176 = sand.u32 %s54, 1
        %s177 = smul.addr %s176, 16
        %s178 = scalar_lea.vmem [#allocation10], %s177
        %p179 = pneg %p67
        %p180 = pneg %p64
        %p181 = pneg %p88
        %p182 = pneg %p85
        %p183 = scmp.eq.s32.totalorder %s20, 0
        // Predicated region
        $region37: #{tpu_custom_call.1} parent=27 // pred_check
          %p184 = pneg %p183
        $region38: #{tpu_custom_call.1} parent=27 // pred_check_branch
          %186 = sbr.rel (%p184) target = $region40
        $region39: #{tpu_custom_call.1} parent=27 // pred_region
          %187 = vst [vmem:[#allocation2] sm:$0x1] 0.0
          %188 = vst [vmem:[#allocation3] sm:$0x1] 0.0
          %189 = vst [vmem:[#allocation4] sm:$0x1] 0.0
          %190 = vst [vmem:[#allocation5] sm:$0x1] 0.0
          %191 = vst [vmem:[#allocation6] sm:$0x1] 0.0
        $region40: #{tpu_custom_call.1} parent=27 // pred_fallthru
          _
        %v192 = vld [vmem:[%s154] sm:$0x1]
        %v193 = vld [vmem:[%s163] sm:$0xff]
        %v194 = vld [vmem:[%s163 + $0x8] sm:$0xff]
        %v195 = vsub.f32 0.0, %v192
        %v196 = vadd.f32 %v195, 1.25
        %v197 = vmax.f32 %v196, 0.0
        %v198 = vadd.f32 %v193, 0.25
        %v199 = vadd.f32 %v194, 0.25
        %v200 = vmax.f32 %v198, 0.0
        %v201 = vmax.f32 %v199, 0.0
        %v202 = vsub.f32 %v192, 0.8
        %v203 = vmul.f32 %v202, 0.5
        %v204 = vtanh.pop %v203
        %v205 = vadd.f32 %v204, 1.0
        %v206 = vmul.f32 %v205, 0.5
        %v207 = vmul.f32 %v206, 0.1
        %v208 = vadd.f32 %v207, 0.75
        %v209 = vsub.f32 0.0, %v193
        %v210 = vsub.f32 0.0, %v194
        %v211 = vsub.f32 %v209, 0.2
        %v212 = vsub.f32 %v210, 0.2
        %v213 = vmul.f32 %v211, 0.5
        %v214 = vmul.f32 %v212, 0.5
        %v215 = vtanh.pop %v213
        %v216 = vtanh.pop %v214
        %v217 = vadd.f32 %v215, 1.0
        %v218 = vadd.f32 %v216, 1.0
        %v219 = vmul.f32 %v217, 0.5
        %v220 = vmul.f32 %v218, 0.5
        %v221 = vmul.f32 %v219, 0.1
        %v222 = vmul.f32 %v220, 0.1
        %v223 = vsub.f32 0.25, %v221
        %v224 = vsub.f32 0.25, %v222
        %v225 = vsub.f32 0.0, %v197
        %v226 = vsub.f32 %v192, %v208
        %v227 = vmul.f32 %v225, %v226
        %v228 = vmul.f32 %v227, 64.0
        %v229 = vsub.f32 %v193, %v223
        %v230 = vsub.f32 %v194, %v224
        %v231 = vmul.f32 %v200, %v229
        %v232 = vmul.f32 %v201, %v230
        %v233 = vmul.f32 %v231, 64.0
        %v234 = vmul.f32 %v232, 64.0
        %v235 = vmax.f32 %v233, %v234
        %v236 = vrot.slane %v235, 4
        %v237 = vmax.f32 %v235, %v236
        %v238 = vrot.slane %v237, 2
        %v239 = vmax.f32 %v237, %v238
        %v240 = vrot.slane %v239, 1
        %v241 = vmax.f32 %v239, %v240
        %v242 = vsub.f32 %v233, %v241
        %v243 = vsub.f32 %v234, %v241
        %v244 = vmul.f32 %v242, 1.442695
        %v245 = vpow.pop %v244
        %v246 = vmul.f32 %v243, 1.442695
        %v247 = vpow.pop %v246
        %v248 = vadd.f32 %v245, %v247
        %v249 = vrot.slane %v248, 4
        %v250 = vadd.f32 %v248, %v249
        %v251 = vrot.slane %v250, 2
        %v252 = vadd.f32 %v250, %v251
        %v253 = vrot.slane %v252, 1
        %v254 = vadd.f32 %v252, %v253
        %v255 = vlog2.pop %v254
        %v256 = vmul.f32 %v255, 0.6931472
        %v257 = vadd.f32 %v256, %v241
        %v258 = vadd.f32 %v257, %v228
        %v259 = vmax.f32 %v258, 0.0
        %v260 = vand.u32 2147483647, %v258
        %v261 = vsub.f32 0.0, %v260
        %v262 = vmul.f32 %v261, 1.442695
        %v263 = vpow.pop %v262
        %v264 = vadd.f32 %v263, 1.0
        %v265 = vlog2.pop %v264
        %v266 = vmul.f32 %v265, 0.6931472
        %v267 = vmul.f32 -0.5, %v263
        %v268 = vadd.f32 %v267, 1.0
        %v269 = vmul.f32 %v268, %v263
        %v270 = vand.u32 2147483647, %v263
        %vm271 = vcmp.lt.f32.partialorder %v270, 0.0004427343
        %v272 = vsel %vm271, %v269, %v266
        %v273 = vadd.f32 %v259, %v272
        %v274 = vmul.f32 %v192, %v192
        %v275 = vadd.f32 %v193, %v194
        %v276 = vrot.slane %v275, 4
        %v277 = vadd.f32 %v275, %v276
        %v278 = vrot.slane %v277, 2
        %v279 = vadd.f32 %v277, %v278
        %v280 = vrot.slane %v279, 1
        %v281 = vadd.f32 %v279, %v280
        %v282 = vmul.f32 %v193, %v193
        %v283 = vmul.f32 %v194, %v194
        %v284 = vadd.f32 %v282, %v283
        %v285 = vrot.slane %v284, 4
        %v286 = vadd.f32 %v284, %v285
        %v287 = vrot.slane %v286, 2
        %v288 = vadd.f32 %v286, %v287
        %v289 = vrot.slane %v288, 1
        %v290 = vadd.f32 %v288, %v289
        %p291 = scmp.lt.s32.totalorder %s20, 2
        // Predicated region
        $region41: #{tpu_custom_call.1} parent=27 // pred_check
          %p292 = pneg %p291
        $region42: #{tpu_custom_call.1} parent=27 // pred_check_branch
          %294 = sbr.rel (%p292) target = $region44
        $region43: #{tpu_custom_call.1} parent=27 // pred_region
          %v295 = vld [vmem:[#allocation2] sm:$0x1]
          %v296 = vadd.f32 %v295, %v273
          %297 = vst [vmem:[#allocation2] sm:$0x1] %v296
          %v298 = vld [vmem:[#allocation3] sm:$0x1]
          %v299 = vadd.f32 %v298, %v192
          %300 = vst [vmem:[#allocation3] sm:$0x1] %v299
          %v301 = vld [vmem:[#allocation4] sm:$0x1]
          %v302 = vadd.f32 %v301, %v274
          %303 = vst [vmem:[#allocation4] sm:$0x1] %v302
          %v304 = vld [vmem:[#allocation5] sm:$0x1]
          %v305 = vadd.f32 %v304, %v281
          %306 = vst [vmem:[#allocation5] sm:$0x1] %v305
          %v307 = vld [vmem:[#allocation6] sm:$0x1]
          %v308 = vadd.f32 %v307, %v290
          %309 = vst [vmem:[#allocation6] sm:$0x1] %v308
        $region44: #{tpu_custom_call.1} parent=27 // pred_fallthru
          _
        %p310 = scmp.eq.s32.totalorder %s20, 2
        // Predicated region
        $region45: #{tpu_custom_call.1} parent=27 // pred_check
          %p311 = pneg %p310
        $region46: #{tpu_custom_call.1} parent=27 // pred_check_branch
          %313 = sbr.rel (%p311) target = $region48
        $region47: #{tpu_custom_call.1} parent=27 // pred_region
          %v314 = vlaneseq
          %v315 = vand.u32 %v314, 127
          %s316 = smul.u32 %s20, 128
          %v317 = vstv %s316
          %v318 = vadd.s32 %v317, %v315
          %vm319 = vcmp.lt.s32.totalorder %v318, 300
          %v320 = vsel %vm319, %v273, 0.0
          %v321 = vsel %vm319, %v192, 0.0
          %v322 = vsel %vm319, %v274, 0.0
          %v323 = vsel %vm319, %v281, 0.0
          %v324 = vsel %vm319, %v290, 0.0
          %v325 = vld [vmem:[#allocation2] sm:$0x1]
          %v326 = vadd.f32 %v325, %v320
          %327 = vst [vmem:[#allocation2] sm:$0x1] %v326
          %v328 = vld [vmem:[#allocation3] sm:$0x1]
          %v329 = vadd.f32 %v328, %v321
          %330 = vst [vmem:[#allocation3] sm:$0x1] %v329
          %v331 = vld [vmem:[#allocation4] sm:$0x1]
          %v332 = vadd.f32 %v331, %v322
          %333 = vst [vmem:[#allocation4] sm:$0x1] %v332
          %v334 = vld [vmem:[#allocation5] sm:$0x1]
          %v335 = vadd.f32 %v334, %v323
          %336 = vst [vmem:[#allocation5] sm:$0x1] %v335
          %v337 = vld [vmem:[#allocation6] sm:$0x1]
          %v338 = vadd.f32 %v337, %v324
          %339 = vst [vmem:[#allocation6] sm:$0x1] %v338
          %v340 = vld [vmem:[#allocation2] sm:$0x1]
          %vm341 = vcmask 1040384
          %v342 = vsel %vm341, %v340, 0.0
          %343 = vadd.xlane.f32.xlu0 %v342
          %v344 = vpop.xlane.xlu0 %343
          %v345 = vrot.slane %v344, 4
          %v346 = vadd.f32 %v344, %v345
          %v347 = vrot.slane %v346, 2
          %v348 = vadd.f32 %v346, %v347
          %v349 = vrot.slane %v348, 1
          %v350 = vadd.f32 %v348, %v349
          %s351 = vtos %v350
          %v352 = vld [vmem:[#allocation3] sm:$0x1]
          %v353 = vsel %vm341, %v352, 0.0
          %354 = vadd.xlane.f32.xlu0 %v353
          %v355 = vpop.xlane.xlu0 %354
          %v356 = vrot.slane %v355, 4
          %v357 = vadd.f32 %v355, %v356
          %v358 = vrot.slane %v357, 2
          %v359 = vadd.f32 %v357, %v358
          %v360 = vrot.slane %v359, 1
          %v361 = vadd.f32 %v359, %v360
          %s362 = vtos %v361
          %v363 = vld [vmem:[#allocation4] sm:$0x1]
          %v364 = vsel %vm341, %v363, 0.0
          %365 = vadd.xlane.f32.xlu0 %v364
          %v366 = vpop.xlane.xlu0 %365
          %v367 = vrot.slane %v366, 4
          %v368 = vadd.f32 %v366, %v367
          %v369 = vrot.slane %v368, 2
          %v370 = vadd.f32 %v368, %v369
          %v371 = vrot.slane %v370, 1
          %v372 = vadd.f32 %v370, %v371
          %s373 = vtos %v372
          %v374 = vld [vmem:[#allocation5] sm:$0x1]
          %v375 = vsel %vm341, %v374, 0.0
          %376 = vadd.xlane.f32.xlu0 %v375
          %v377 = vpop.xlane.xlu0 %376
          %v378 = vrot.slane %v377, 4
          %v379 = vadd.f32 %v377, %v378
          %v380 = vrot.slane %v379, 2
          %v381 = vadd.f32 %v379, %v380
          %v382 = vrot.slane %v381, 1
          %v383 = vadd.f32 %v381, %v382
          %s384 = vtos %v383
          %v385 = vld [vmem:[#allocation6] sm:$0x1]
          %v386 = vsel %vm341, %v385, 0.0
          %387 = vadd.xlane.f32.xlu0 %v386
          %v388 = vpop.xlane.xlu0 %387
          %v389 = vrot.slane %v388, 4
          %v390 = vadd.f32 %v388, %v389
          %v391 = vrot.slane %v390, 2
          %v392 = vadd.f32 %v390, %v391
          %v393 = vrot.slane %v392, 1
          %v394 = vadd.f32 %v392, %v393
          %s395 = vtos %v394
          %s396 = smul.f32 %s351, 0.0033333334
          %s397 = smul.f32 %s362, 0.0033333334
          %s398 = smul.f32 %s384, 0.00020833334
          %s399 = smul.f32 %s397, 300.0
          %s400 = smul.f32 %s399, %s397
          %s401 = ssub.f32 %s373, %s400
          %s402 = smul.f32 %s401, 0.0033444816
          %s403 = smul.f32 %s398, 4800.0
          %s404 = smul.f32 %s403, %s398
          %s405 = ssub.f32 %s395, %s404
          %s406 = smul.f32 %s405, 0.00020837675
          %s407 = smax.f32 %s402, 0.0
          %v408 = vstv %s407
          %v409 = vrsqrt.pop %v408
          %v410 = vmul.f32 %v408, %v409
          %vm411 = vcmp.eq.f32.partialorder %v408, inf
          %v412 = vsel %vm411, %v408, %v410
          %vm413 = vcmp.eq.f32.partialorder %v408, 0.0
          %v414 = vand.u32 %v408, 2147483648
          %v415 = vsel %vm413, %v414, %v412
          %s416 = vtos %v415
          %s417 = smax.f32 %s406, 0.0
          %v418 = vstv %s417
          %v419 = vrsqrt.pop %v418
          %v420 = vmul.f32 %v418, %v419
          %vm421 = vcmp.eq.f32.partialorder %v418, inf
          %v422 = vsel %vm421, %v418, %v420
          %vm423 = vcmp.eq.f32.partialorder %v418, 0.0
          %v424 = vand.u32 %v418, 2147483648
          %v425 = vsel %vm423, %v424, %v422
          %s426 = vtos %v425
          %s427 = sadd.f32 %s416, %s426
          %s428 = smul.f32 %s427, 0.1
          %s429 = sadd.f32 %s396, %s428
          %s430 = scalar_lea.smem [#allocation12], 0
          %431 = sst [smem:[%s430]] %s429
        $region48: #{tpu_custom_call.1} parent=27 // pred_fallthru
          _
        // Predicated region
        $region49: #{tpu_custom_call.1} parent=27 // pred_check
          %p432 = pneg %p85
        $region50: #{tpu_custom_call.1} parent=27 // pred_check_branch
          %434 = sbr.rel (%p432) target = $region52
        $region51: #{tpu_custom_call.1} parent=27 // pred_region
          %s436 = ssub.s32 16, 16
          %437 = vsyncadd [#allocation9], %s436
          %440 = dma.smem_to_hbm [#allocation12], 16, %s2, [#allocation9]
        $region52: #{tpu_custom_call.1} parent=27 // pred_fallthru
          _
        // Predicated region
        $region53: #{tpu_custom_call.1} parent=27 // pred_check
          %p441 = pneg %p85
        $region54: #{tpu_custom_call.1} parent=27 // pred_check_branch
          %443 = sbr.rel (%p441) target = $region56
        $region55: #{tpu_custom_call.1} parent=27 // pred_region
          %444 = dma.done [#allocation9], 16
        $region56: #{tpu_custom_call.1} parent=27 // pred_fallthru
          _
        %445 = sfence
      $region28: #{tpu_custom_call.1} parent=5 // pred_fallthru
        _
      %p446 = scmp.le.s32.totalorder 2, %s15
      // Predicated region
      $region57: #{tpu_custom_call.1} parent=5 // pred_check
        %p447 = pneg %p446
      $region58: #{tpu_custom_call.1} parent=5 // pred_check_branch
        %449 = sbr.rel (%p447) target = $region60
      $region59: #{tpu_custom_call.1} parent=5 // pred_region
        %s450 = ssub.s32 %s15, 2
      $region60: #{tpu_custom_call.1} parent=5 // pred_fallthru
        _
    $region6: #{tpu_custom_call.1} parent=1 // loop_footer
      %s19 = sadd.s32 1, %s15
    $region7: #{tpu_custom_call.1} parent=1 // loop_footer_branch
      %14 = sbr.rel target = $region3
    $region8: #{tpu_custom_call.1} parent=1 // loop_exit
      _
    %451 = vsyncpa [#allocation8], 1
    %s452 = scalar_lea.sflag [#allocation8], 1
    %453 = vsyncpa %s452, 1
    %454 = vsyncpa [#allocation11], 1
    %s455 = scalar_lea.sflag [#allocation11], 1
    %456 = vsyncpa %s455, 1
    %457 = vsyncpa [#allocation9], 1
    %s458 = scalar_lea.sflag [#allocation9], 1
    %459 = vsyncpa %s458, 1

</llo_original>
